<compile_context>
chip_gen: v5e
topology: v5e:2x2
jax: 0.10.0
libtpu: 0.0.40
codegen_flags: <defaults>
</compile_context>

<pallas_src>
import functools

import numpy as np
import jax
import jax.numpy as jnp
from jax.experimental import pallas as pl
from jax.experimental.pallas import tpu as pltpu


def _round_up(x, m):
    return ((x + m - 1) // m) * m


# ---------------------------------------------------------------------------
# Host-side glue: perspective parameters + homography coefficients
# (mirrors torchvision.transforms.functional._get_perspective_coeffs)
# ---------------------------------------------------------------------------
def _perspective_coeffs(startpoints, endpoints):
    a = np.zeros((8, 8), dtype=np.float64)
    for i, (p1, p2) in enumerate(zip(endpoints, startpoints)):
        a[2 * i] = [p1[0], p1[1], 1.0, 0.0, 0.0, 0.0, -p2[0] * p1[0], -p2[0] * p1[1]]
        a[2 * i + 1] = [0.0, 0.0, 0.0, p1[0], p1[1], 1.0, -p2[1] * p1[0], -p2[1] * p1[1]]
    b = np.array(startpoints, dtype=np.float64).reshape(8)
    coeffs, _, _, _ = np.linalg.lstsq(a, b, rcond=None)
    return coeffs  # float64 (c0..c7)


def _get_perspective_params(width, height, distortion_scale, rng):
    half_h, half_w = height // 2, width // 2
    dw = int(distortion_scale * half_w)
    dh = int(distortion_scale * half_h)
    topleft = [int(rng.randint(0, dw + 1)), int(rng.randint(0, dh + 1))]
    topright = [int(rng.randint(width - dw - 1, width)), int(rng.randint(0, dh + 1))]
    botright = [int(rng.randint(width - dw - 1, width)),
                int(rng.randint(height - dh - 1, height))]
    botleft = [int(rng.randint(0, dw + 1)), int(rng.randint(height - dh - 1, height))]
    startpoints = [[0, 0], [width - 1, 0], [width - 1, height - 1], [0, height - 1]]
    endpoints = [topleft, topright, botright, botleft]
    return startpoints, endpoints


def _build_bilinear_matrix(coeffs, H, W, out_cols):
    """A_T[src, out] = bilinear weight of flattened source pixel `src` for
    flattened output pixel `out`.  Mirrors torchvision F.perspective:
    inverse homography on pixel-center (+0.5) coordinates followed by
    grid_sample(bilinear, padding='zeros', align_corners=False)."""
    HW = H * W
    out_idx = np.arange(HW, dtype=np.int64)
    oy = out_idx // W
    ox = out_idx % W
    x = ox.astype(np.float64) + 0.5
    y = oy.astype(np.float64) + 0.5
    c = coeffs
    den = c[6] * x + c[7] * y + 1.0
    sx = (c[0] * x + c[1] * y + c[2]) / den - 0.5
    sy = (c[3] * x + c[4] * y + c[5]) / den - 0.5
    x0 = np.floor(sx)
    y0 = np.floor(sy)
    wx1 = sx - x0
    wx0 = 1.0 - wx1
    wy1 = sy - y0
    wy0 = 1.0 - wy1

    a_t = np.zeros((HW, out_cols), dtype=np.float32)
    for yi, xi, w in ((y0, x0, wy0 * wx0), (y0, x0 + 1.0, wy0 * wx1),
                      (y0 + 1.0, x0, wy1 * wx0), (y0 + 1.0, x0 + 1.0, wy1 * wx1)):
        valid = (xi >= 0.0) & (xi <= W - 1.0) & (yi >= 0.0) & (yi <= H - 1.0)
        src = yi[valid].astype(np.int64) * W + xi[valid].astype(np.int64)
        np.add.at(a_t, (src, out_idx[valid]), w[valid].astype(np.float32))
    return a_t


# ---------------------------------------------------------------------------
# Pallas kernel: one MXU matmul (warp of all rows) + fused brightness epilogue
# ---------------------------------------------------------------------------
def _warp_bright_kernel(lhs_ref, at_ref, scale_ref, out_ref):
    # lhs_ref:   (R, HW)      bf16, VMEM-resident across the grid
    # at_ref:    (HW, T_OUT)  bf16 bilinear-weight slab for this output tile
    # scale_ref: (R, 1)       f32 per-row brightness scale (1.0 for mask rows)
    acc = jnp.dot(lhs_ref[...], at_ref[...], preferred_element_type=jnp.float32)
    out_ref[...] = jnp.clip(acc * scale_ref[...], 0.0, 1.0)
    # TODO(synk): JPEG stage applied as identity (class not defined in reference).


# ---------------------------------------------------------------------------
# Wrapper (Combine.forward equivalent)
# ---------------------------------------------------------------------------
def combine_forward(image, mask, params, brightness_factor=1.25, seed=0):
    _jpeg_quality, distortion_scale = params
    N, C, H, W = image.shape
    Cm = mask.shape[1]
    HW = H * W
    NC = N * C
    NM = N * Cm
    R = NC + NM

    # Perspective is sampled once per call and shared by the whole batch,
    # exactly like the reference (F.perspective is applied to the full tensor).
    # TODO(synk): torch RNG parity is not reproducible here; numpy RandomState.
    rng = np.random.RandomState(seed)
    startpoints, endpoints = _get_perspective_params(W, H, distortion_scale, rng)
    coeffs = _perspective_coeffs(startpoints, endpoints)

    # Tile the output-pixel (lane) axis so the double-buffered bf16 A_T slab
    # stays within a few MiB (fits default scoped VMEM on v5e/v6e/v7x).
    slab_budget = 4 * 1024 * 1024                       # bytes per buffer
    max_t = max(128, (slab_budget // (2 * HW)) // 128 * 128)
    t_out = min(_round_up(HW, 128), max_t)              # multiple of 128
    hw_out_p = _round_up(HW, t_out)                     # lane-dense, padded
    grid = hw_out_p // t_out

    # bf16 operands halve VMEM/DMA and hit the native bf16 MXU rate; the
    # accumulation stays f32 (small precision loss acceptable for augmentation).
    a_t = jnp.asarray(_build_bilinear_matrix(coeffs, H, W, hw_out_p),
                      dtype=jnp.bfloat16)

    # Fuse image + mask rows of the whole batch into one LHS.
    lhs = jnp.concatenate(
        [image.reshape(NC, HW), mask.reshape(NM, HW)], axis=0
    ).astype(jnp.bfloat16)

    # Per-row epilogue scale: brightness for image rows, 1.0 for mask rows.
    scale = jnp.asarray(
        np.concatenate([np.full((NC, 1), brightness_factor, dtype=np.float32),
                        np.ones((NM, 1), dtype=np.float32)], axis=0))

    out = pl.pallas_call(
        _warp_bright_kernel,
        out_shape=jax.ShapeDtypeStruct((R, hw_out_p), jnp.float32),
        grid_spec=pltpu.PrefetchScalarGridSpec(
            num_scalar_prefetch=0,
            grid=(grid,),
            in_specs=[
                pl.BlockSpec((R, HW), lambda j: (0, 0)),       # resident LHS
                pl.BlockSpec((HW, t_out), lambda j: (0, j)),   # A_T slab
                pl.BlockSpec((R, 1), lambda j: (0, 0)),        # row scales
            ],
            out_specs=pl.BlockSpec((R, t_out), lambda j: (0, j)),
        ),
        compiler_params=pltpu.CompilerParams(
            dimension_semantics=("parallel",)),
    )(lhs, a_t, scale)

    out = out[:, :HW]
    img_out = out[:NC].reshape(N, C, H, W)
    mask_out = out[NC:].reshape(N, Cm, H, W)
    return img_out, mask_out


if __name__ == "__main__":
    key = jax.random.PRNGKey(0)
    k1, k2 = jax.random.split(key)
    N, C, H, W = 2, 4, 16, 16
    image = jax.random.uniform(k1, (N, C, H, W), dtype=jnp.float32)
    mask = (jax.random.uniform(k2, (N, 1, H, W)) > 0.5).astype(jnp.float32)

    params = (80, 0.4)  # (jpeg quality [identity], perspective distortion_scale)
    img_out, mask_out = combine_forward(image, mask, params)
    jax.block_until_ready((img_out, mask_out))

    assert img_out.shape == image.shape and mask_out.shape == mask.shape
    assert img_out.dtype == jnp.float32 and mask_out.dtype == jnp.float32
    assert bool(jnp.isfinite(img_out).all()) and bool(jnp.isfinite(mask_out).all())
    print("KERNEL_OK")
</pallas_src>

<mosaic_0001>
module attributes {stable_mosaic.version = 11 : i64} {
  func.func @_warp_bright_kernel(%arg0: i32, %arg1: memref<10x256xbf16, #tpu.memory_space<vmem>>, %arg2: memref<256x256xbf16, #tpu.memory_space<vmem>>, %arg3: memref<10x1xf32, #tpu.memory_space<vmem>>, %arg4: memref<10x256xf32, #tpu.memory_space<vmem>>) attributes {dimension_semantics = [#tpu.dimension_semantics<parallel>], iteration_bounds = array<i64: 1>, scalar_prefetch = 0 : i64, scratch_operands = 0 : i64, tpu.core_type = #tpu.core_type<tc>, window_params = [{pipeline_mode = #tpu.pipeline_mode<synchronous>, transform_indices = @transform_0, window_bounds = array<i64: 10, 256>}, {transform_indices = @transform_1, window_bounds = array<i64: 256, 256>}, {pipeline_mode = #tpu.pipeline_mode<synchronous>, transform_indices = @transform_2, window_bounds = array<i64: 10, 1>}, {transform_indices = @transform_3, window_bounds = array<i64: 10, 256>}]} {
    %c0 = arith.constant 0 : index
    %c0_0 = arith.constant 0 : index
    %0 = vector.load %arg1[%c0, %c0_0] : memref<10x256xbf16, #tpu.memory_space<vmem>>, vector<10x256xbf16>
    %c0_1 = arith.constant 0 : index
    %c0_2 = arith.constant 0 : index
    %1 = vector.load %arg2[%c0_1, %c0_2] : memref<256x256xbf16, #tpu.memory_space<vmem>>, vector<256x256xbf16>
    %cst = arith.constant dense<0.000000e+00> : vector<10x256xf32>
    %2 = tpu.matmul %0, %1, %cst {dimension_numbers = #tpu.dot_dimension_numbers<[1], [0], [0], [1], [0, 0, 1, 1], [], []>} : vector<10x256xbf16>, vector<256x256xbf16>, vector<10x256xf32> -> vector<10x256xf32>
    %c0_3 = arith.constant 0 : index
    %c0_4 = arith.constant 0 : index
    %3 = vector.load %arg3[%c0_3, %c0_4] : memref<10x1xf32, #tpu.memory_space<vmem>>, vector<10x1xf32>
    %4 = vector.broadcast %3 : vector<10x1xf32> to vector<10x256xf32>
    %5 = arith.mulf %2, %4 : vector<10x256xf32>
    %cst_5 = arith.constant 0.000000e+00 : f32
    %cst_6 = arith.constant 1.000000e+00 : f32
    %6 = vector.broadcast %cst_5 : f32 to vector<10x256xf32>
    %7 = arith.maximumf %6, %5 : vector<10x256xf32>
    %8 = vector.broadcast %cst_6 : f32 to vector<10x256xf32>
    %9 = arith.minimumf %8, %7 : vector<10x256xf32>
    %c0_7 = arith.constant 0 : index
    %c0_8 = arith.constant 0 : index
    %10 = vector.load %arg4[%c0_7, %c0_8] : memref<10x256xf32, #tpu.memory_space<vmem>>, vector<10x256xf32>
    tpu.vector_store %arg4[%c0_7, %c0_8], %9 {strides = array<i32>} : memref<10x256xf32, #tpu.memory_space<vmem>>, vector<10x256xf32>,
    return
  }
  func.func @transform_0(%arg0: i32) -> (i32, i32) {
    %c0_i32 = arith.constant 0 : i32
    %c0_i32_0 = arith.constant 0 : i32
    %c0_i32_1 = arith.constant 0 : i32
    return %c0_i32, %c0_i32_0 : i32, i32
  }
  func.func @transform_1(%arg0: i32) -> (i32, i32) {
    %c0_i32 = arith.constant 0 : i32
    %c0_i32_0 = arith.constant 0 : i32
    return %c0_i32, %arg0 : i32, i32
  }
  func.func @transform_2(%arg0: i32) -> (i32, i32) {
    %c0_i32 = arith.constant 0 : i32
    %c0_i32_0 = arith.constant 0 : i32
    %c0_i32_1 = arith.constant 0 : i32
    return %c0_i32, %c0_i32_0 : i32, i32
  }
  func.func @transform_3(%arg0: i32) -> (i32, i32) {
    %c0_i32 = arith.constant 0 : i32
    %c0_i32_0 = arith.constant 0 : i32
    return %c0_i32, %arg0 : i32, i32
  }
}

</mosaic_0001>

<llo_original>
// kernel: tpu_custom_call.1
$region0: #{tpu_custom_call.1}
  #allocation0 [shape = 'u32[]', space=smem, size = 0x4, offset = 0x4, fixed_abs, tag = 'smem constant byte address 0x4 - core index']
  #allocation1 [shape = 'u32[72,128]{1,0:T(1,128)}', space=vmem, size = 0x9000, scoped, tag = 'internal scratch']
  %s0 = inlined_call_operand.vmem [shape: bf16[10,256], index: 0, kind: input, shape index: {}]
  %s1 = inlined_call_operand.hbm [shape: bf16[256,256], index: 1, kind: input, shape index: {}]
  %s2 = inlined_call_operand.vmem [shape: f32[10,1], index: 2, kind: input, shape index: {}]
  %s3 = inlined_call_operand.hbm [shape: f32[10,256], index: 3, kind: output, shape index: {}]
  %s4 = sld [smem:[#allocation0]]
  $region26: #{tpu_custom_call.1} parent=0
    _
  %s6 = ssub.s32 1, %s4
  %s7 = scalar_select 0, %s6, %s4
  $region1: #{tpu_custom_call.1} parent=0
    #allocation2 [shape = 'u8[131072]{0}', space=vmem, size = 0x20000, scoped, tag = 'input window, operand 1, single buffered']
    #allocation3 [shape = 's32[1]{0}', space=sflag, size = 0x4, scoped, tag = 'scoped memory for tpu_custom_call.1']
    #allocation4 [shape = 's32[1]{0}', space=sflag, size = 0x4, scoped, tag = 'scoped memory for tpu_custom_call.1']
    #allocation5 [shape = 'u8[16384]{0}', space=vmem, size = 0x4000, scoped, tag = 'output window, operand 0, single buffered']
    %8 = vsyncpa [#allocation3], 0
    %9 = vsyncpa [#allocation4], 0
    // Predicated region
    $region2: #{tpu_custom_call.1} parent=1 // pred_check
      _
    $region3: #{tpu_custom_call.1} parent=1 // pred_check_branch
      %11 = sbr.rel (0) target = $region5
    $region4: #{tpu_custom_call.1} parent=1 // pred_region
      _
    $region5: #{tpu_custom_call.1} parent=1 // pred_fallthru
      _
    // Predicated region
    $region6: #{tpu_custom_call.1} parent=1 // pred_check
      _
    $region7: #{tpu_custom_call.1} parent=1 // pred_check_branch
      %13 = sbr.rel (0) target = $region9
    $region8: #{tpu_custom_call.1} parent=1 // pred_region
      %15 = vsyncadd [#allocation3], 0
      %s16 = sshll.u32 %s1, 4
      %s17 = int_to_ptr.hbm [resolvable:$true] %s16
      %s18 = sshll.u32 [#allocation2], 4
      %s19 = int_to_ptr.vmem [resolvable:$true] %s18
      %24 = dma.hbm_to_vmem [thread:$0]  %s17, 4096, %s19, [#allocation3], 128, 128, 8
    $region9: #{tpu_custom_call.1} parent=1 // pred_fallthru
      _
    // Predicated region
    $region10: #{tpu_custom_call.1} parent=1 // pred_check
      _
    $region11: #{tpu_custom_call.1} parent=1 // pred_check_branch
      %26 = sbr.rel (0) target = $region13
    $region12: #{tpu_custom_call.1} parent=1 // pred_region
      _
    $region13: #{tpu_custom_call.1} parent=1 // pred_fallthru
      _
    // Predicated region
    $region14: #{tpu_custom_call.1} parent=1 // pred_check
      _
    $region15: #{tpu_custom_call.1} parent=1 // pred_check_branch
      %28 = sbr.rel (0) target = $region17
    $region16: #{tpu_custom_call.1} parent=1 // pred_region
      %30 = dma.done [#allocation3], 4096
    $region17: #{tpu_custom_call.1} parent=1 // pred_fallthru
      _
    %v31 = vld [vmem:[%s0] sm:$0xff]
    %v32 = vld [vmem:[%s0 + $0x8] sm:$0x11]
    %v33 = vld [vmem:[#allocation2] sm:$0xff]
    %v34 = vld [vmem:[#allocation2 + $0x8] sm:$0xff]
    %v35 = vld [vmem:[#allocation2 + $0x10] sm:$0xff]
    %v36 = vld [vmem:[#allocation2 + $0x18] sm:$0xff]
    %v37 = vld [vmem:[#allocation2 + $0x20] sm:$0xff]
    %v38 = vld [vmem:[#allocation2 + $0x28] sm:$0xff]
    %v39 = vld [vmem:[#allocation2 + $0x30] sm:$0xff]
    %v40 = vld [vmem:[#allocation2 + $0x38] sm:$0xff]
    %v41 = vld [vmem:[#allocation2 + $0x40] sm:$0xff]
    %v42 = vld [vmem:[#allocation2 + $0x48] sm:$0xff]
    %v43 = vld [vmem:[#allocation2 + $0x50] sm:$0xff]
    %v44 = vld [vmem:[#allocation2 + $0x58] sm:$0xff]
    %v45 = vld [vmem:[#allocation2 + $0x60] sm:$0xff]
    %v46 = vld [vmem:[#allocation2 + $0x68] sm:$0xff]
    %v47 = vld [vmem:[#allocation2 + $0x70] sm:$0xff]
    %v48 = vld [vmem:[#allocation2 + $0x78] sm:$0xff]
    %v49 = vld [vmem:[#allocation2 + $0x80] sm:$0xff]
    %v50 = vld [vmem:[#allocation2 + $0x88] sm:$0xff]
    %v51 = vld [vmem:[#allocation2 + $0x90] sm:$0xff]
    %v52 = vld [vmem:[#allocation2 + $0x98] sm:$0xff]
    %v53 = vld [vmem:[#allocation2 + $0xa0] sm:$0xff]
    %v54 = vld [vmem:[#allocation2 + $0xa8] sm:$0xff]
    %v55 = vld [vmem:[#allocation2 + $0xb0] sm:$0xff]
    %v56 = vld [vmem:[#allocation2 + $0xb8] sm:$0xff]
    %v57 = vld [vmem:[#allocation2 + $0xc0] sm:$0xff]
    %v58 = vld [vmem:[#allocation2 + $0xc8] sm:$0xff]
    %v59 = vld [vmem:[#allocation2 + $0xd0] sm:$0xff]
    %v60 = vld [vmem:[#allocation2 + $0xd8] sm:$0xff]
    %v61 = vld [vmem:[#allocation2 + $0xe0] sm:$0xff]
    %v62 = vld [vmem:[#allocation2 + $0xe8] sm:$0xff]
    %v63 = vld [vmem:[#allocation2 + $0xf0] sm:$0xff]
    %v64 = vld [vmem:[#allocation2 + $0xf8] sm:$0xff]
    %v67 = vunpack.c.l.b16 %v31
    %v68 = vunpack.c.h.b16 %v31
    %v69 = vunpack.c.l.b16 %v32
    %v70 = vunpack.c.h.b16 %v32
    %v71 = vpack.c.b16 %v69, %v67
    %v72 = vpack.c.b16 %v70, %v68
    %v107 = vunpack.c.l.b16 %v33
    %v108 = vunpack.c.h.b16 %v33
    %v109 = vunpack.c.l.b16 %v34
    %v110 = vunpack.c.h.b16 %v34
    %v111 = vunpack.c.l.b16 %v35
    %v112 = vunpack.c.h.b16 %v35
    %v113 = vunpack.c.l.b16 %v36
    %v114 = vunpack.c.h.b16 %v36
    %v115 = vunpack.c.l.b16 %v37
    %v116 = vunpack.c.h.b16 %v37
    %v117 = vunpack.c.l.b16 %v38
    %v118 = vunpack.c.h.b16 %v38
    %v119 = vunpack.c.l.b16 %v39
    %v120 = vunpack.c.h.b16 %v39
    %v121 = vunpack.c.l.b16 %v40
    %v122 = vunpack.c.h.b16 %v40
    %v123 = vunpack.c.l.b16 %v41
    %v124 = vunpack.c.h.b16 %v41
    %v125 = vunpack.c.l.b16 %v42
    %v126 = vunpack.c.h.b16 %v42
    %v127 = vunpack.c.l.b16 %v43
    %v128 = vunpack.c.h.b16 %v43
    %v129 = vunpack.c.l.b16 %v44
    %v130 = vunpack.c.h.b16 %v44
    %v131 = vunpack.c.l.b16 %v45
    %v132 = vunpack.c.h.b16 %v45
    %v133 = vunpack.c.l.b16 %v46
    %v134 = vunpack.c.h.b16 %v46
    %v135 = vunpack.c.l.b16 %v47
    %v136 = vunpack.c.h.b16 %v47
    %v137 = vunpack.c.l.b16 %v48
    %v138 = vunpack.c.h.b16 %v48
    %v139 = vunpack.c.l.b16 %v49
    %v140 = vunpack.c.h.b16 %v49
    %v141 = vunpack.c.l.b16 %v50
    %v142 = vunpack.c.h.b16 %v50
    %v143 = vunpack.c.l.b16 %v51
    %v144 = vunpack.c.h.b16 %v51
    %v145 = vunpack.c.l.b16 %v52
    %v146 = vunpack.c.h.b16 %v52
    %v147 = vunpack.c.l.b16 %v53
    %v148 = vunpack.c.h.b16 %v53
    %v149 = vunpack.c.l.b16 %v54
    %v150 = vunpack.c.h.b16 %v54
    %v151 = vunpack.c.l.b16 %v55
    %v152 = vunpack.c.h.b16 %v55
    %v153 = vunpack.c.l.b16 %v56
    %v154 = vunpack.c.h.b16 %v56
    %v155 = vunpack.c.l.b16 %v57
    %v156 = vunpack.c.h.b16 %v57
    %v157 = vunpack.c.l.b16 %v58
    %v158 = vunpack.c.h.b16 %v58
    %v159 = vunpack.c.l.b16 %v59
    %v160 = vunpack.c.h.b16 %v59
    %v161 = vunpack.c.l.b16 %v60
    %v162 = vunpack.c.h.b16 %v60
    %v163 = vunpack.c.l.b16 %v61
    %v164 = vunpack.c.h.b16 %v61
    %v165 = vunpack.c.l.b16 %v62
    %v166 = vunpack.c.h.b16 %v62
    %v167 = vunpack.c.l.b16 %v63
    %v168 = vunpack.c.h.b16 %v63
    %v169 = vunpack.c.l.b16 %v64
    %v170 = vunpack.c.h.b16 %v64
    %v171 = vpack.c.b16 %v109, %v107
    %v172 = vpack.c.b16 %v110, %v108
    %v173 = vpack.c.b16 %v113, %v111
    %v174 = vpack.c.b16 %v114, %v112
    %v175 = vpack.c.b16 %v117, %v115
    %v176 = vpack.c.b16 %v118, %v116
    %v177 = vpack.c.b16 %v121, %v119
    %v178 = vpack.c.b16 %v122, %v120
    %v179 = vpack.c.b16 %v125, %v123
    %v180 = vpack.c.b16 %v126, %v124
    %v181 = vpack.c.b16 %v129, %v127
    %v182 = vpack.c.b16 %v130, %v128
    %v183 = vpack.c.b16 %v133, %v131
    %v184 = vpack.c.b16 %v134, %v132
    %v185 = vpack.c.b16 %v137, %v135
    %v186 = vpack.c.b16 %v138, %v136
    %v187 = vpack.c.b16 %v141, %v139
    %v188 = vpack.c.b16 %v142, %v140
    %v189 = vpack.c.b16 %v145, %v143
    %v190 = vpack.c.b16 %v146, %v144
    %v191 = vpack.c.b16 %v149, %v147
    %v192 = vpack.c.b16 %v150, %v148
    %v193 = vpack.c.b16 %v153, %v151
    %v194 = vpack.c.b16 %v154, %v152
    %v195 = vpack.c.b16 %v157, %v155
    %v196 = vpack.c.b16 %v158, %v156
    %v197 = vpack.c.b16 %v161, %v159
    %v198 = vpack.c.b16 %v162, %v160
    %v199 = vpack.c.b16 %v165, %v163
    %v200 = vpack.c.b16 %v166, %v164
    %v201 = vpack.c.b16 %v169, %v167
    %v202 = vpack.c.b16 %v170, %v168
    %235 = vmatpush.bf16.msra.mxu0 %v185
    %236 = vmatpush.bf16.msra.mxu0 %v183
    %237 = vmatpush.bf16.msra.mxu0 %v181
    %238 = vmatpush.bf16.msra.mxu0 %v179
    %239 = vmatpush.bf16.msra.mxu0 %v177
    %240 = vmatpush.bf16.msra.mxu0 %v175
    %241 = vmatpush.bf16.msra.mxu0 %v173
    %242 = vmatpush.bf16.msra.mxu0 %v171
    %243 = vmatmul.bf16.gmra.mxu0 %v71
    %v244 = vpop.f32.mrf.mxu0
    %v245 = vadd.f32 0.0, %v244
    %v246 = vpop.f32.mrf.mxu0
    %v247 = vadd.f32 0.0, %v246
    %248 = vdwg.mxu0
    %249 = vmatpush.bf16.msra.mxu0 %v201
    %250 = vmatpush.bf16.msra.mxu0 %v199
    %251 = vmatpush.bf16.msra.mxu0 %v197
    %252 = vmatpush.bf16.msra.mxu0 %v195
    %253 = vmatpush.bf16.msra.mxu0 %v193
    %254 = vmatpush.bf16.msra.mxu0 %v191
    %255 = vmatpush.bf16.msra.mxu0 %v189
    %256 = vmatpush.bf16.msra.mxu0 %v187
    %257 = vmatmul.bf16.gmra.mxu0 %v72
    %v258 = vpop.f32.mrf.mxu0
    %v259 = vadd.f32 %v245, %v258
    %v260 = vpop.f32.mrf.mxu0
    %v261 = vadd.f32 %v247, %v260
    %262 = vdwg.mxu0
    %263 = vmatpush.bf16.msra.mxu0 %v186
    %264 = vmatpush.bf16.msra.mxu0 %v184
    %265 = vmatpush.bf16.msra.mxu0 %v182
    %266 = vmatpush.bf16.msra.mxu0 %v180
    %267 = vmatpush.bf16.msra.mxu0 %v178
    %268 = vmatpush.bf16.msra.mxu0 %v176
    %269 = vmatpush.bf16.msra.mxu0 %v174
    %270 = vmatpush.bf16.msra.mxu0 %v172
    %271 = vmatmul.bf16.gmra.mxu0 %v71
    %v272 = vpop.f32.mrf.mxu0
    %v273 = vadd.f32 0.0, %v272
    %v274 = vpop.f32.mrf.mxu0
    %v275 = vadd.f32 0.0, %v274
    %276 = vdwg.mxu0
    %277 = vmatpush.bf16.msra.mxu0 %v202
    %278 = vmatpush.bf16.msra.mxu0 %v200
    %279 = vmatpush.bf16.msra.mxu0 %v198
    %280 = vmatpush.bf16.msra.mxu0 %v196
    %281 = vmatpush.bf16.msra.mxu0 %v194
    %282 = vmatpush.bf16.msra.mxu0 %v192
    %283 = vmatpush.bf16.msra.mxu0 %v190
    %284 = vmatpush.bf16.msra.mxu0 %v188
    %285 = vmatmul.bf16.gmra.mxu0 %v72
    %v286 = vpop.f32.mrf.mxu0
    %v287 = vadd.f32 %v273, %v286
    %v288 = vpop.f32.mrf.mxu0
    %v289 = vadd.f32 %v275, %v288
    %290 = vdwg.mxu0
    %v291 = vld [vmem:[%s2] sm:$0xff]
    %v292 = vld [vmem:[%s2 + $0x8] sm:$0x3]
    %294 = vset.pattern.permute.xlu0 0
    %295 = vperm.xlu0 %294, %v291
    %v296 = vpop.permute.xlu0 %295
    %299 = vset.pattern.permute.xlu0 0
    %300 = vperm.xlu0 %299, %v292
    %v301 = vpop.permute.xlu0 %300
    %v303 = vmul.f32 %v259, %v296
    %v304 = vmul.f32 %v287, %v296
    %v305 = vmul.f32 %v261, %v301
    %v306 = vmul.f32 %v289, %v301
    %v307 = vmax.f32 %v303, 0.0
    %v308 = vmax.f32 %v304, 0.0
    %v309 = vmax.f32 %v305, 0.0
    %v310 = vmax.f32 %v306, 0.0
    %v311 = vmin.f32 %v307, 1.0
    %v312 = vmin.f32 %v308, 1.0
    %v313 = vmin.f32 %v309, 1.0
    %v314 = vmin.f32 %v310, 1.0
    %315 = vst [vmem:[#allocation5] sm:$0xff] %v311
    %316 = vst [vmem:[#allocation5 + $0x8] sm:$0xff] %v312
    %317 = vst [vmem:[#allocation5 + $0x10] sm:$0x3] %v313
    %318 = vst [vmem:[#allocation5 + $0x18] sm:$0x3] %v314
    // Predicated region
    $region18: #{tpu_custom_call.1} parent=1 // pred_check
      _
    $region19: #{tpu_custom_call.1} parent=1 // pred_check_branch
      %320 = sbr.rel (0) target = $region21
    $region20: #{tpu_custom_call.1} parent=1 // pred_region
      %322 = vsyncadd [#allocation4], 0
      %s323 = sshll.u32 [#allocation5], 4
      %s324 = int_to_ptr.vmem [resolvable:$true] %s323
      %s325 = sshll.u32 %s3, 4
      %s326 = int_to_ptr.hbm [resolvable:$true] %s325
      %331 = dma.vmem_to_hbm [thread:$0]  %s324, 512, %s326, [#allocation4], 256, 256, 16
    $region21: #{tpu_custom_call.1} parent=1 // pred_fallthru
      _
    // Predicated region
    $region22: #{tpu_custom_call.1} parent=1 // pred_check
      _
    $region23: #{tpu_custom_call.1} parent=1 // pred_check_branch
      %333 = sbr.rel (0) target = $region25
    $region24: #{tpu_custom_call.1} parent=1 // pred_region
      %335 = dma.done [#allocation4], 512
    $region25: #{tpu_custom_call.1} parent=1 // pred_fallthru
      _
    %336 = vsyncpa [#allocation3], 1
    %337 = vsyncpa [#allocation4], 1

</llo_original>
